<compile_context>
chip_gen: v7x
topology: tpu7x:2x2x1
jax: 0.10.0
libtpu: 0.0.40
codegen_flags: <defaults>
</compile_context>

<pallas_src>
import jax
import jax.numpy as jnp
from jax.experimental import pallas as pl
from jax.experimental.pallas import tpu as pltpu


def _round_up(x, m):
    return ((x + m - 1) // m) * m


def _fc_kernel(x_ref,
               w1_ref, b1_ref,
               w2_ref, b2_ref,
               w3_ref, b3_ref,
               w4_ref, b4_ref,
               w5_ref, b5_ref,
               o_ref):
    """One (TB, D) batch tile through the fused 5-layer MLP.

    Hidden-layer matmuls run on the MXU in the operand dtype (bf16 by default)
    with f32 accumulation; bias + ReLU happen in f32; activations are re-cast
    to the operand dtype before the next dot so the MXU stays fed.
    """
    compute_dtype = x_ref.dtype
    h = x_ref[...]                                      # (TB, D)

    # Four D->D Linear+ReLU layers (static Python loop, unrolled at trace time).
    for w_ref, b_ref in ((w1_ref, b1_ref), (w2_ref, b2_ref),
                         (w3_ref, b3_ref), (w4_ref, b4_ref)):
        acc = jnp.dot(h, w_ref[...], preferred_element_type=jnp.float32)
        acc = acc + b_ref[...]                          # bias in f32
        acc = jnp.maximum(acc, 0.0)                     # ReLU in f32
        h = acc.astype(compute_dtype)

    # Final D -> 1 projection; b5 is a single scalar living in SMEM.
    out = jnp.dot(h, w5_ref[...], preferred_element_type=jnp.float32)
    out = out + b5_ref[0, 0]
    # TODO(synk): output last-dim is 1 so this is a masked store; a lane-dense
    # (1, B) output layout would shave store overhead, but it needs a
    # sublane->lane relayout and the store cost is negligible vs. the 4 DxD dots.
    o_ref[...] = out.astype(o_ref.dtype)


def fc_forward(x, params, *, compute_dtype=jnp.bfloat16, block_b=128):
    """x: (B, D).  params: w1..w4 (D,D), b1..b4 (1,D), w5 (D,1), b5 (1,1).

    Weights are stored (in_features, out_features); biases are (1, out)."""
    B, D = x.shape
    out_dtype = x.dtype

    # Batch tile: multiple of 8 sublanes; pad B up to a whole number of tiles.
    tb = min(_round_up(block_b, 8), _round_up(B, 8))
    b_pad = _round_up(B, tb)
    n_tiles = b_pad // tb

    xp = x.astype(compute_dtype)
    if b_pad != B:
        xp = jnp.pad(xp, ((0, b_pad - B), (0, 0)))

    cd = compute_dtype
    args = (
        xp,
        params["w1"].astype(cd), params["b1"].astype(jnp.float32),
        params["w2"].astype(cd), params["b2"].astype(jnp.float32),
        params["w3"].astype(cd), params["b3"].astype(jnp.float32),
        params["w4"].astype(cd), params["b4"].astype(jnp.float32),
        params["w5"].astype(cd), params["b5"].astype(jnp.float32),
    )

    # x / out stream over the grid; weights & biases use constant index_maps so
    # they are fetched once and stay resident in VMEM for every batch tile.
    x_spec = pl.BlockSpec((tb, D), lambda i: (i, 0))
    w_spec = pl.BlockSpec((D, D), lambda i: (0, 0))
    b_spec = pl.BlockSpec((1, D), lambda i: (0, 0))
    w5_spec = pl.BlockSpec((D, 1), lambda i: (0, 0))
    b5_spec = pl.BlockSpec(memory_space=pltpu.MemorySpace.SMEM)   # scalar bias
    out_spec = pl.BlockSpec((tb, 1), lambda i: (i, 0))

    in_specs = [x_spec,
                w_spec, b_spec,
                w_spec, b_spec,
                w_spec, b_spec,
                w_spec, b_spec,
                w5_spec, b5_spec]

    # VMEM budget: resident weights (default double-buffered) + streamed x/out
    # tiles + f32 intermediates, clamped to fit v5e/v6e.  For very large D the
    # resident-weight plan must shrink (smaller tb / K-tiling) on v7x (64 MiB).
    cbytes = jnp.dtype(cd).itemsize
    resident = 2 * ((4 * D * D + D) * cbytes + 4 * D * 4)
    streamed = 2 * (tb * D * cbytes + tb * 4)
    scratch = 6 * tb * D * 4
    vmem_limit = int(min(max(resident + streamed + scratch + (4 << 20),
                             32 << 20), 96 << 20))

    flops = 2 * b_pad * D * (4 * D + 1)
    bytes_accessed = int(sum(a.size * a.dtype.itemsize for a in args)
                         + b_pad * jnp.dtype(out_dtype).itemsize)

    out = pl.pallas_call(
        _fc_kernel,
        out_shape=jax.ShapeDtypeStruct((b_pad, 1), out_dtype),
        grid=(n_tiles,),
        in_specs=in_specs,
        out_specs=out_spec,
        compiler_params=pltpu.CompilerParams(
            dimension_semantics=("parallel",),
            vmem_limit_bytes=vmem_limit,
        ),
        cost_estimate=pl.CostEstimate(
            flops=flops, transcendentals=0, bytes_accessed=bytes_accessed),
    )(*args)
    return out[:B]


def init_params(key, input_size):
    """Deterministic init matching PyTorch Linear default (uniform +-1/sqrt(fan_in)).
    Weights stored as (in_features, out_features)."""
    D = input_size
    shapes = [
        ("w1", (D, D)), ("b1", (1, D)),
        ("w2", (D, D)), ("b2", (1, D)),
        ("w3", (D, D)), ("b3", (1, D)),
        ("w4", (D, D)), ("b4", (1, D)),
        ("w5", (D, 1)), ("b5", (1, 1)),
    ]
    params = {}
    keys = jax.random.split(key, len(shapes))
    for (name, shape), k in zip(shapes, keys):
        fan_in = shape[0] if name.startswith("w") else D
        bound = 1.0 / (fan_in ** 0.5)
        params[name] = jax.random.uniform(
            k, shape, dtype=jnp.float32, minval=-bound, maxval=bound)
    return params


def fc_reference(x, params, compute_dtype=jnp.float32):
    """Pure-JAX reference with the same dtype handling as the kernel."""
    h = x.astype(compute_dtype)
    for i in range(1, 5):
        a = jnp.dot(h, params[f"w{i}"].astype(compute_dtype),
                    preferred_element_type=jnp.float32) + params[f"b{i}"]
        h = jnp.maximum(a, 0.0).astype(compute_dtype)
    out = jnp.dot(h, params["w5"].astype(compute_dtype),
                  preferred_element_type=jnp.float32) + params["b5"]
    return out.astype(x.dtype)


if __name__ == "__main__":
    key = jax.random.PRNGKey(0)
    k_x, k_p = jax.random.split(key)

    batch, input_size = 24, 32          # small demo; block_b=8 -> grid of 3 tiles
    x = jax.random.normal(k_x, (batch, input_size), dtype=jnp.float32)
    params = init_params(k_p, input_size)

    # f32 compute path: faithful to the PyTorch module's f32 semantics.
    out_f32 = jax.block_until_ready(
        fc_forward(x, params, compute_dtype=jnp.float32, block_b=8))
    ref_f32 = fc_reference(x, params, compute_dtype=jnp.float32)
    assert out_f32.shape == (batch, 1), out_f32.shape
    assert jnp.allclose(out_f32, ref_f32, atol=1e-5, rtol=1e-5), "f32 mismatch"

    # bf16-operand path (MXU-friendly on v6e/v7x), f32 accumulation.
    out_bf16 = jax.block_until_ready(
        fc_forward(x, params, compute_dtype=jnp.bfloat16, block_b=8))
    ref_bf16 = fc_reference(x, params, compute_dtype=jnp.bfloat16)
    assert out_bf16.shape == (batch, 1), out_bf16.shape
    assert jnp.allclose(out_bf16, ref_bf16, atol=2e-3, rtol=2e-3), "bf16 mismatch"
    assert jnp.allclose(out_bf16, ref_f32, atol=1e-1, rtol=1e-1), "bf16 drift"

    print("KERNEL_OK")
</pallas_src>

<mosaic_0001>
module attributes {stable_mosaic.version = 11 : i64} {
  func.func @_fc_kernel(%arg0: i32, %arg1: memref<8x32xf32, #tpu.memory_space<vmem>>, %arg2: memref<32x32xf32, #tpu.memory_space<vmem>>, %arg3: memref<1x32xf32, #tpu.memory_space<vmem>>, %arg4: memref<32x32xf32, #tpu.memory_space<vmem>>, %arg5: memref<1x32xf32, #tpu.memory_space<vmem>>, %arg6: memref<32x32xf32, #tpu.memory_space<vmem>>, %arg7: memref<1x32xf32, #tpu.memory_space<vmem>>, %arg8: memref<32x32xf32, #tpu.memory_space<vmem>>, %arg9: memref<1x32xf32, #tpu.memory_space<vmem>>, %arg10: memref<32x1xf32, #tpu.memory_space<vmem>>, %arg11: memref<1x1xf32, #tpu.memory_space<smem>>, %arg12: memref<8x1xf32, #tpu.memory_space<vmem>>) attributes {dimension_semantics = [#tpu.dimension_semantics<parallel>], iteration_bounds = array<i64: 3>, scalar_prefetch = 0 : i64, scratch_operands = 0 : i64, tpu.core_type = #tpu.core_type<tc>, window_params = [{transform_indices = @transform_0, window_bounds = array<i64: 8, 32>}, {pipeline_mode = #tpu.pipeline_mode<synchronous>, transform_indices = @transform_1, window_bounds = array<i64: 32, 32>}, {pipeline_mode = #tpu.pipeline_mode<synchronous>, transform_indices = @transform_2, window_bounds = array<i64: 1, 32>}, {pipeline_mode = #tpu.pipeline_mode<synchronous>, transform_indices = @transform_3, window_bounds = array<i64: 32, 32>}, {pipeline_mode = #tpu.pipeline_mode<synchronous>, transform_indices = @transform_4, window_bounds = array<i64: 1, 32>}, {pipeline_mode = #tpu.pipeline_mode<synchronous>, transform_indices = @transform_5, window_bounds = array<i64: 32, 32>}, {pipeline_mode = #tpu.pipeline_mode<synchronous>, transform_indices = @transform_6, window_bounds = array<i64: 1, 32>}, {pipeline_mode = #tpu.pipeline_mode<synchronous>, transform_indices = @transform_7, window_bounds = array<i64: 32, 32>}, {pipeline_mode = #tpu.pipeline_mode<synchronous>, transform_indices = @transform_8, window_bounds = array<i64: 1, 32>}, {pipeline_mode = #tpu.pipeline_mode<synchronous>, transform_indices = @transform_9, window_bounds = array<i64: 32, 1>}, {transform_indices = @transform_10, window_bounds = array<i64: 1, 1>}, {transform_indices = @transform_11, window_bounds = array<i64: 8, 1>}]} {
    %c0 = arith.constant 0 : index
    %c0_0 = arith.constant 0 : index
    %0 = vector.load %arg1[%c0, %c0_0] : memref<8x32xf32, #tpu.memory_space<vmem>>, vector<8x32xf32>
    %c0_1 = arith.constant 0 : index
    %c0_2 = arith.constant 0 : index
    %1 = vector.load %arg2[%c0_1, %c0_2] : memref<32x32xf32, #tpu.memory_space<vmem>>, vector<32x32xf32>
    %cst = arith.constant dense<0.000000e+00> : vector<8x32xf32>
    %2 = tpu.matmul %0, %1, %cst {dimension_numbers = #tpu.dot_dimension_numbers<[1], [0], [0], [1], [0, 0, 1, 1], [], []>} : vector<8x32xf32>, vector<32x32xf32>, vector<8x32xf32> -> vector<8x32xf32>
    %c0_3 = arith.constant 0 : index
    %c0_4 = arith.constant 0 : index
    %3 = vector.load %arg3[%c0_3, %c0_4] : memref<1x32xf32, #tpu.memory_space<vmem>>, vector<1x32xf32>
    %4 = vector.broadcast %3 : vector<1x32xf32> to vector<8x32xf32>
    %5 = arith.addf %2, %4 : vector<8x32xf32>
    %cst_5 = arith.constant 0.000000e+00 : f32
    %6 = vector.broadcast %cst_5 : f32 to vector<8x32xf32>
    %7 = arith.maximumf %5, %6 : vector<8x32xf32>
    %c0_6 = arith.constant 0 : index
    %c0_7 = arith.constant 0 : index
    %8 = vector.load %arg4[%c0_6, %c0_7] : memref<32x32xf32, #tpu.memory_space<vmem>>, vector<32x32xf32>
    %cst_8 = arith.constant dense<0.000000e+00> : vector<8x32xf32>
    %9 = tpu.matmul %7, %8, %cst_8 {dimension_numbers = #tpu.dot_dimension_numbers<[1], [0], [0], [1], [0, 0, 1, 1], [], []>} : vector<8x32xf32>, vector<32x32xf32>, vector<8x32xf32> -> vector<8x32xf32>
    %c0_9 = arith.constant 0 : index
    %c0_10 = arith.constant 0 : index
    %10 = vector.load %arg5[%c0_9, %c0_10] : memref<1x32xf32, #tpu.memory_space<vmem>>, vector<1x32xf32>
    %11 = vector.broadcast %10 : vector<1x32xf32> to vector<8x32xf32>
    %12 = arith.addf %9, %11 : vector<8x32xf32>
    %cst_11 = arith.constant 0.000000e+00 : f32
    %13 = vector.broadcast %cst_11 : f32 to vector<8x32xf32>
    %14 = arith.maximumf %12, %13 : vector<8x32xf32>
    %c0_12 = arith.constant 0 : index
    %c0_13 = arith.constant 0 : index
    %15 = vector.load %arg6[%c0_12, %c0_13] : memref<32x32xf32, #tpu.memory_space<vmem>>, vector<32x32xf32>
    %cst_14 = arith.constant dense<0.000000e+00> : vector<8x32xf32>
    %16 = tpu.matmul %14, %15, %cst_14 {dimension_numbers = #tpu.dot_dimension_numbers<[1], [0], [0], [1], [0, 0, 1, 1], [], []>} : vector<8x32xf32>, vector<32x32xf32>, vector<8x32xf32> -> vector<8x32xf32>
    %c0_15 = arith.constant 0 : index
    %c0_16 = arith.constant 0 : index
    %17 = vector.load %arg7[%c0_15, %c0_16] : memref<1x32xf32, #tpu.memory_space<vmem>>, vector<1x32xf32>
    %18 = vector.broadcast %17 : vector<1x32xf32> to vector<8x32xf32>
    %19 = arith.addf %16, %18 : vector<8x32xf32>
    %cst_17 = arith.constant 0.000000e+00 : f32
    %20 = vector.broadcast %cst_17 : f32 to vector<8x32xf32>
    %21 = arith.maximumf %19, %20 : vector<8x32xf32>
    %c0_18 = arith.constant 0 : index
    %c0_19 = arith.constant 0 : index
    %22 = vector.load %arg8[%c0_18, %c0_19] : memref<32x32xf32, #tpu.memory_space<vmem>>, vector<32x32xf32>
    %cst_20 = arith.constant dense<0.000000e+00> : vector<8x32xf32>
    %23 = tpu.matmul %21, %22, %cst_20 {dimension_numbers = #tpu.dot_dimension_numbers<[1], [0], [0], [1], [0, 0, 1, 1], [], []>} : vector<8x32xf32>, vector<32x32xf32>, vector<8x32xf32> -> vector<8x32xf32>
    %c0_21 = arith.constant 0 : index
    %c0_22 = arith.constant 0 : index
    %24 = vector.load %arg9[%c0_21, %c0_22] : memref<1x32xf32, #tpu.memory_space<vmem>>, vector<1x32xf32>
    %25 = vector.broadcast %24 : vector<1x32xf32> to vector<8x32xf32>
    %26 = arith.addf %23, %25 : vector<8x32xf32>
    %cst_23 = arith.constant 0.000000e+00 : f32
    %27 = vector.broadcast %cst_23 : f32 to vector<8x32xf32>
    %28 = arith.maximumf %26, %27 : vector<8x32xf32>
    %c0_24 = arith.constant 0 : index
    %c0_25 = arith.constant 0 : index
    %29 = vector.load %arg10[%c0_24, %c0_25] : memref<32x1xf32, #tpu.memory_space<vmem>>, vector<32x1xf32>
    %cst_26 = arith.constant dense<0.000000e+00> : vector<8x1xf32>
    %30 = tpu.matmul %28, %29, %cst_26 {dimension_numbers = #tpu.dot_dimension_numbers<[1], [0], [0], [1], [0, 0, 1, 1], [], []>} : vector<8x32xf32>, vector<32x1xf32>, vector<8x1xf32> -> vector<8x1xf32>
    %c0_27 = arith.constant 0 : index
    %c0_28 = arith.constant 0 : index
    %31 = memref.load %arg11[%c0_27, %c0_28] : memref<1x1xf32, #tpu.memory_space<smem>>
    %32 = vector.broadcast %31 : f32 to vector<8x1xf32>
    %33 = arith.addf %30, %32 : vector<8x1xf32>
    %c0_29 = arith.constant 0 : index
    %c0_30 = arith.constant 0 : index
    %34 = vector.load %arg12[%c0_29, %c0_30] : memref<8x1xf32, #tpu.memory_space<vmem>>, vector<8x1xf32>
    tpu.vector_store %arg12[%c0_29, %c0_30], %33 {strides = array<i32>} : memref<8x1xf32, #tpu.memory_space<vmem>>, vector<8x1xf32>,
    return
  }
  func.func @transform_0(%arg0: i32) -> (i32, i32) {
    %c0_i32 = arith.constant 0 : i32
    %c0_i32_0 = arith.constant 0 : i32
    return %arg0, %c0_i32 : i32, i32
  }
  func.func @transform_1(%arg0: i32) -> (i32, i32) {
    %c0_i32 = arith.constant 0 : i32
    %c0_i32_0 = arith.constant 0 : i32
    %c0_i32_1 = arith.constant 0 : i32
    return %c0_i32, %c0_i32_0 : i32, i32
  }
  func.func @transform_2(%arg0: i32) -> (i32, i32) {
    %c0_i32 = arith.constant 0 : i32
    %c0_i32_0 = arith.constant 0 : i32
    %c0_i32_1 = arith.constant 0 : i32
    return %c0_i32, %c0_i32_0 : i32, i32
  }
  func.func @transform_3(%arg0: i32) -> (i32, i32) {
    %c0_i32 = arith.constant 0 : i32
    %c0_i32_0 = arith.constant 0 : i32
    %c0_i32_1 = arith.constant 0 : i32
    return %c0_i32, %c0_i32_0 : i32, i32
  }
  func.func @transform_4(%arg0: i32) -> (i32, i32) {
    %c0_i32 = arith.constant 0 : i32
    %c0_i32_0 = arith.constant 0 : i32
    %c0_i32_1 = arith.constant 0 : i32
    return %c0_i32, %c0_i32_0 : i32, i32
  }
  func.func @transform_5(%arg0: i32) -> (i32, i32) {
    %c0_i32 = arith.constant 0 : i32
    %c0_i32_0 = arith.constant 0 : i32
    %c0_i32_1 = arith.constant 0 : i32
    return %c0_i32, %c0_i32_0 : i32, i32
  }
  func.func @transform_6(%arg0: i32) -> (i32, i32) {
    %c0_i32 = arith.constant 0 : i32
    %c0_i32_0 = arith.constant 0 : i32
    %c0_i32_1 = arith.constant 0 : i32
    return %c0_i32, %c0_i32_0 : i32, i32
  }
  func.func @transform_7(%arg0: i32) -> (i32, i32) {
    %c0_i32 = arith.constant 0 : i32
    %c0_i32_0 = arith.constant 0 : i32
    %c0_i32_1 = arith.constant 0 : i32
    return %c0_i32, %c0_i32_0 : i32, i32
  }
  func.func @transform_8(%arg0: i32) -> (i32, i32) {
    %c0_i32 = arith.constant 0 : i32
    %c0_i32_0 = arith.constant 0 : i32
    %c0_i32_1 = arith.constant 0 : i32
    return %c0_i32, %c0_i32_0 : i32, i32
  }
  func.func @transform_9(%arg0: i32) -> (i32, i32) {
    %c0_i32 = arith.constant 0 : i32
    %c0_i32_0 = arith.constant 0 : i32
    %c0_i32_1 = arith.constant 0 : i32
    return %c0_i32, %c0_i32_0 : i32, i32
  }
  func.func @transform_10(%arg0: i32) -> (i32, i32) {
    %c0_i32 = arith.constant 0 : i32
    %c0_i32_0 = arith.constant 0 : i32
    %c0_i32_1 = arith.constant 0 : i32
    return %c0_i32, %c0_i32_0 : i32, i32
  }
  func.func @transform_11(%arg0: i32) -> (i32, i32) {
    %c0_i32 = arith.constant 0 : i32
    %c0_i32_0 = arith.constant 0 : i32
    return %arg0, %c0_i32 : i32, i32
  }
}

</mosaic_0001>

<llo_original>
// kernel: tpu_custom_call.1
$region0: #{tpu_custom_call.1}
  #allocation0 [shape = 'u32[]', space=smem, size = 0x4, offset = 0x4, fixed_abs, tag = 'smem constant byte address 0x4 - core index']
  #allocation1 [shape = 'u32[144,128]{1,0:T(1,128)}', space=vmem, size = 0x12000, scoped, tag = 'internal scratch']
  #allocation2 [shape = 'f32[1,1]{1,0:T(1,128)S(6)}', space=smem, size = 0x200, scoped, tag = 'scoped memory for tpu_custom_call.1']
  %s0 = inlined_call_operand.hbm [shape: f32[24,32], index: 0, kind: input, shape index: {}]
  %s1 = inlined_call_operand.vmem [shape: f32[32,32], index: 1, kind: input, shape index: {}]
  %s2 = inlined_call_operand.vmem [shape: f32[1,32], index: 2, kind: input, shape index: {}]
  %s3 = inlined_call_operand.hbm [shape: f32[32,32], index: 3, kind: input, shape index: {}]
  %s4 = inlined_call_operand.vmem [shape: f32[1,32], index: 4, kind: input, shape index: {}]
  %s5 = inlined_call_operand.hbm [shape: f32[32,32], index: 5, kind: input, shape index: {}]
  %s6 = inlined_call_operand.vmem [shape: f32[1,32], index: 6, kind: input, shape index: {}]
  %s7 = inlined_call_operand.hbm [shape: f32[32,32], index: 7, kind: input, shape index: {}]
  %s8 = inlined_call_operand.vmem [shape: f32[1,32], index: 8, kind: input, shape index: {}]
  %s9 = inlined_call_operand.vmem [shape: f32[32,1], index: 9, kind: input, shape index: {}]
  %s10 = inlined_call_operand.<no memory space> [shape: f32[1,1], index: 10, kind: input, shape index: {}]
  %s11 = inlined_call_operand.vmem [shape: f32[24,1], index: 11, kind: output, shape index: {}]
  %s12 = sld [smem:[#allocation0]]
  $region93: #{tpu_custom_call.1} parent=0
    _
  %s14 = ssub.s32 1, %s12
  %s15 = scalar_select 0, %s14, %s12
  %16 = sst [smem:[#allocation2]] %s10
  $region1: #{tpu_custom_call.1} parent=0
    #allocation3 [shape = 'u8[8192]{0}', space=vmem, size = 0x2000, scoped, tag = 'input window, operand 0']
    #allocation4 [shape = 's32[2]{0}', space=sflag, size = 0x8, scoped, tag = 'scoped memory for tpu_custom_call.1']
    #allocation5 [shape = 'u8[16384]{0}', space=vmem, size = 0x4000, scoped, tag = 'input window, operand 3, single buffered']
    #allocation6 [shape = 's32[1]{0}', space=sflag, size = 0x4, scoped, tag = 'scoped memory for tpu_custom_call.1']
    #allocation7 [shape = 'u8[16384]{0}', space=vmem, size = 0x4000, scoped, tag = 'input window, operand 5, single buffered']
    #allocation8 [shape = 'u8[16384]{0}', space=vmem, size = 0x4000, scoped, tag = 'input window, operand 7, single buffered']
    #allocation9 [shape = 's32[1]{0}', space=sflag, size = 0x4, scoped, tag = 'scoped memory for tpu_custom_call.1']
    %17 = vsyncpa [#allocation4], 0
    %s18 = scalar_lea.sflag [#allocation4], 1
    %19 = vsyncpa %s18, 0
    %20 = vsyncpa [#allocation6], 0
    %21 = vsyncpa [#allocation9], 0
    loop: start=0, step=1, limit=5
    $region2: #{tpu_custom_call.1} parent=1 // loop_pre_header
      _
    $region3: #{tpu_custom_call.1} parent=1 // loop_header
      %s23 = sphi 0, %s27
      %p24 = scmp.ge.s32.totalorder %s23, 5
      %s33 = sphi 0, %s35
      %s36 = sphi 0, %s33
      %s37 = sphi 0, %s36
      %s53 = sphi 0, %s37
      %s57 = sphi 0, %s57
      %s59 = sphi 0, %s57
      %s60 = sphi 0, %s59
      %s74 = sphi 0, %s60
      %s78 = sphi 0, %s78
      %s80 = sphi 0, %s78
      %s81 = sphi 0, %s80
      %s95 = sphi 0, %s81
      %s99 = sphi 0, %s99
      %s101 = sphi 0, %s99
      %s102 = sphi 0, %s101
      %s116 = sphi 0, %s102
      %s120 = sphi 0, %s120
      %s122 = sphi 0, %s120
      %s123 = sphi 0, %s122
      %s137 = sphi 0, %s123
      %s141 = sphi 0, %s141
      %s143 = sphi 0, %s141
      %s144 = sphi 0, %s143
      %s158 = sphi 0, %s144
      %s162 = sphi 0, %s162
      %s164 = sphi 0, %s162
      %s165 = sphi 0, %s164
      %s179 = sphi 0, %s165
      %s183 = sphi 0, %s183
      %s185 = sphi 0, %s183
      %s186 = sphi 0, %s185
      %s200 = sphi 0, %s186
      %s204 = sphi 0, %s204
      %s206 = sphi 0, %s204
      %s207 = sphi 0, %s206
      %s221 = sphi 0, %s207
      %s225 = sphi 0, %s225
      %s227 = sphi 0, %s225
      %s228 = sphi 0, %s227
      %s242 = sphi 0, %s228
      %s246 = sphi 0, %s246
      %s248 = sphi 0, %s246
      %s249 = sphi 0, %s248
      %s263 = sphi 0, %s249
      %s269 = sphi 0, %s271
      %s272 = sphi 0, %s269
      %s273 = sphi 0, %s272
      %s289 = sphi 0, %s273
    $region4: #{tpu_custom_call.1} parent=1 // loop_header_branch
      %26 = sbr.rel (%p24) target = $region8
    $region5: #{tpu_custom_call.1} parent=1 // loop_body
      %s28 = ssub.s32 %s23, 1
      %s29 = ssub.s32 %s23, 2
      %s30 = sadd.s32 %s23, 1
      %s31 = ssub.s32 %s23, %s30
      %p32 = scmp.eq.s32.totalorder %s31, 0
      %s34 = sadd.s32 %s33, 1
      %s35 = scalar_select %p32, %s33, %s34
      %p38 = pneg %p32
      %p39 = scmp.eq.s32.totalorder %s23, 2
      %p40 = por %p38, %p39
      %p41 = scmp.ne.s32.totalorder %s33, %s36
      %p42 = scmp.eq.s32.totalorder %s23, 0
      %p43 = por %p41, %p42
      %p44 = scmp.ne.s32.totalorder %s33, %s36
      %p45 = scmp.eq.s32.totalorder %s28, 2
      %p46 = por %p44, %p45
      %p47 = scmp.ne.s32.totalorder %s36, %s37
      %p48 = scmp.eq.s32.totalorder %s28, 0
      %p49 = por %p47, %p48
      %p50 = scmp.ne.s32.totalorder %s36, %s37
      %p51 = scmp.eq.s32.totalorder %s29, 2
      %p52 = por %p50, %p51
      %p54 = scmp.ne.s32.totalorder %s37, %s53
      %p55 = scmp.eq.s32.totalorder %s29, 0
      %p56 = por %p54, %p55
      %s58 = sadd.s32 %s57, 1
      %p61 = scmp.eq.s32.totalorder %s23, 2
      %p62 = scmp.ne.s32.totalorder %s57, %s59
      %p63 = scmp.eq.s32.totalorder %s23, 0
      %p64 = por %p62, %p63
      %p65 = scmp.ne.s32.totalorder %s57, %s59
      %p66 = scmp.eq.s32.totalorder %s28, 2
      %p67 = por %p65, %p66
      %p68 = scmp.ne.s32.totalorder %s59, %s60
      %p69 = scmp.eq.s32.totalorder %s28, 0
      %p70 = por %p68, %p69
      %p71 = scmp.ne.s32.totalorder %s59, %s60
      %p72 = scmp.eq.s32.totalorder %s29, 2
      %p73 = por %p71, %p72
      %p75 = scmp.ne.s32.totalorder %s60, %s74
      %p76 = scmp.eq.s32.totalorder %s29, 0
      %p77 = por %p75, %p76
      %s79 = sadd.s32 %s78, 1
      %p82 = scmp.eq.s32.totalorder %s23, 2
      %p83 = scmp.ne.s32.totalorder %s78, %s80
      %p84 = scmp.eq.s32.totalorder %s23, 0
      %p85 = por %p83, %p84
      %p86 = scmp.ne.s32.totalorder %s78, %s80
      %p87 = scmp.eq.s32.totalorder %s28, 2
      %p88 = por %p86, %p87
      %p89 = scmp.ne.s32.totalorder %s80, %s81
      %p90 = scmp.eq.s32.totalorder %s28, 0
      %p91 = por %p89, %p90
      %p92 = scmp.ne.s32.totalorder %s80, %s81
      %p93 = scmp.eq.s32.totalorder %s29, 2
      %p94 = por %p92, %p93
      %p96 = scmp.ne.s32.totalorder %s81, %s95
      %p97 = scmp.eq.s32.totalorder %s29, 0
      %p98 = por %p96, %p97
      %s100 = sadd.s32 %s99, 1
      %p103 = scmp.eq.s32.totalorder %s23, 2
      %p104 = scmp.ne.s32.totalorder %s99, %s101
      %p105 = scmp.eq.s32.totalorder %s23, 0
      %p106 = por %p104, %p105
      %p107 = scmp.ne.s32.totalorder %s99, %s101
      %p108 = scmp.eq.s32.totalorder %s28, 2
      %p109 = por %p107, %p108
      %p110 = scmp.ne.s32.totalorder %s101, %s102
      %p111 = scmp.eq.s32.totalorder %s28, 0
      %p112 = por %p110, %p111
      %p113 = scmp.ne.s32.totalorder %s101, %s102
      %p114 = scmp.eq.s32.totalorder %s29, 2
      %p115 = por %p113, %p114
      %p117 = scmp.ne.s32.totalorder %s102, %s116
      %p118 = scmp.eq.s32.totalorder %s29, 0
      %p119 = por %p117, %p118
      %s121 = sadd.s32 %s120, 1
      %p124 = scmp.eq.s32.totalorder %s23, 2
      %p125 = scmp.ne.s32.totalorder %s120, %s122
      %p126 = scmp.eq.s32.totalorder %s23, 0
      %p127 = por %p125, %p126
      %p128 = scmp.ne.s32.totalorder %s120, %s122
      %p129 = scmp.eq.s32.totalorder %s28, 2
      %p130 = por %p128, %p129
      %p131 = scmp.ne.s32.totalorder %s122, %s123
      %p132 = scmp.eq.s32.totalorder %s28, 0
      %p133 = por %p131, %p132
      %p134 = scmp.ne.s32.totalorder %s122, %s123
      %p135 = scmp.eq.s32.totalorder %s29, 2
      %p136 = por %p134, %p135
      %p138 = scmp.ne.s32.totalorder %s123, %s137
      %p139 = scmp.eq.s32.totalorder %s29, 0
      %p140 = por %p138, %p139
      %s142 = sadd.s32 %s141, 1
      %p145 = scmp.eq.s32.totalorder %s23, 2
      %p146 = scmp.ne.s32.totalorder %s141, %s143
      %p147 = scmp.eq.s32.totalorder %s23, 0
      %p148 = por %p146, %p147
      %p149 = scmp.ne.s32.totalorder %s141, %s143
      %p150 = scmp.eq.s32.totalorder %s28, 2
      %p151 = por %p149, %p150
      %p152 = scmp.ne.s32.totalorder %s143, %s144
      %p153 = scmp.eq.s32.totalorder %s28, 0
      %p154 = por %p152, %p153
      %p155 = scmp.ne.s32.totalorder %s143, %s144
      %p156 = scmp.eq.s32.totalorder %s29, 2
      %p157 = por %p155, %p156
      %p159 = scmp.ne.s32.totalorder %s144, %s158
      %p160 = scmp.eq.s32.totalorder %s29, 0
      %p161 = por %p159, %p160
      %s163 = sadd.s32 %s162, 1
      %p166 = scmp.eq.s32.totalorder %s23, 2
      %p167 = scmp.ne.s32.totalorder %s162, %s164
      %p168 = scmp.eq.s32.totalorder %s23, 0
      %p169 = por %p167, %p168
      %p170 = scmp.ne.s32.totalorder %s162, %s164
      %p171 = scmp.eq.s32.totalorder %s28, 2
      %p172 = por %p170, %p171
      %p173 = scmp.ne.s32.totalorder %s164, %s165
      %p174 = scmp.eq.s32.totalorder %s28, 0
      %p175 = por %p173, %p174
      %p176 = scmp.ne.s32.totalorder %s164, %s165
      %p177 = scmp.eq.s32.totalorder %s29, 2
      %p178 = por %p176, %p177
      %p180 = scmp.ne.s32.totalorder %s165, %s179
      %p181 = scmp.eq.s32.totalorder %s29, 0
      %p182 = por %p180, %p181
      %s184 = sadd.s32 %s183, 1
      %p187 = scmp.eq.s32.totalorder %s23, 2
      %p188 = scmp.ne.s32.totalorder %s183, %s185
      %p189 = scmp.eq.s32.totalorder %s23, 0
      %p190 = por %p188, %p189
      %p191 = scmp.ne.s32.totalorder %s183, %s185
      %p192 = scmp.eq.s32.totalorder %s28, 2
      %p193 = por %p191, %p192
      %p194 = scmp.ne.s32.totalorder %s185, %s186
      %p195 = scmp.eq.s32.totalorder %s28, 0
      %p196 = por %p194, %p195
      %p197 = scmp.ne.s32.totalorder %s185, %s186
      %p198 = scmp.eq.s32.totalorder %s29, 2
      %p199 = por %p197, %p198
      %p201 = scmp.ne.s32.totalorder %s186, %s200
      %p202 = scmp.eq.s32.totalorder %s29, 0
      %p203 = por %p201, %p202
      %s205 = sadd.s32 %s204, 1
      %p208 = scmp.eq.s32.totalorder %s23, 2
      %p209 = scmp.ne.s32.totalorder %s204, %s206
      %p210 = scmp.eq.s32.totalorder %s23, 0
      %p211 = por %p209, %p210
      %p212 = scmp.ne.s32.totalorder %s204, %s206
      %p213 = scmp.eq.s32.totalorder %s28, 2
      %p214 = por %p212, %p213
      %p215 = scmp.ne.s32.totalorder %s206, %s207
      %p216 = scmp.eq.s32.totalorder %s28, 0
      %p217 = por %p215, %p216
      %p218 = scmp.ne.s32.totalorder %s206, %s207
      %p219 = scmp.eq.s32.totalorder %s29, 2
      %p220 = por %p218, %p219
      %p222 = scmp.ne.s32.totalorder %s207, %s221
      %p223 = scmp.eq.s32.totalorder %s29, 0
      %p224 = por %p222, %p223
      %s226 = sadd.s32 %s225, 1
      %p229 = scmp.eq.s32.totalorder %s23, 2
      %p230 = scmp.ne.s32.totalorder %s225, %s227
      %p231 = scmp.eq.s32.totalorder %s23, 0
      %p232 = por %p230, %p231
      %p233 = scmp.ne.s32.totalorder %s225, %s227
      %p234 = scmp.eq.s32.totalorder %s28, 2
      %p235 = por %p233, %p234
      %p236 = scmp.ne.s32.totalorder %s227, %s228
      %p237 = scmp.eq.s32.totalorder %s28, 0
      %p238 = por %p236, %p237
      %p239 = scmp.ne.s32.totalorder %s227, %s228
      %p240 = scmp.eq.s32.totalorder %s29, 2
      %p241 = por %p239, %p240
      %p243 = scmp.ne.s32.totalorder %s228, %s242
      %p244 = scmp.eq.s32.totalorder %s29, 0
      %p245 = por %p243, %p244
      %s247 = sadd.s32 %s246, 1
      %p250 = scmp.eq.s32.totalorder %s23, 2
      %p251 = scmp.ne.s32.totalorder %s246, %s248
      %p252 = scmp.eq.s32.totalorder %s23, 0
      %p253 = por %p251, %p252
      %p254 = scmp.ne.s32.totalorder %s246, %s248
      %p255 = scmp.eq.s32.totalorder %s28, 2
      %p256 = por %p254, %p255
      %p257 = scmp.ne.s32.totalorder %s248, %s249
      %p258 = scmp.eq.s32.totalorder %s28, 0
      %p259 = por %p257, %p258
      %p260 = scmp.ne.s32.totalorder %s248, %s249
      %p261 = scmp.eq.s32.totalorder %s29, 2
      %p262 = por %p260, %p261
      %p264 = scmp.ne.s32.totalorder %s249, %s263
      %p265 = scmp.eq.s32.totalorder %s29, 0
      %p266 = por %p264, %p265
      %s267 = ssub.s32 %s23, %s30
      %p268 = scmp.eq.s32.totalorder %s267, 0
      %s270 = sadd.s32 %s269, 1
      %s271 = scalar_select %p268, %s269, %s270
      %p274 = pneg %p268
      %p275 = scmp.eq.s32.totalorder %s23, 2
      %p276 = por %p274, %p275
      %p277 = scmp.ne.s32.totalorder %s269, %s272
      %p278 = scmp.eq.s32.totalorder %s23, 0
      %p279 = por %p277, %p278
      %p280 = scmp.ne.s32.totalorder %s269, %s272
      %p281 = scmp.eq.s32.totalorder %s28, 2
      %p282 = por %p280, %p281
      %p283 = scmp.ne.s32.totalorder %s272, %s273
      %p284 = scmp.eq.s32.totalorder %s28, 0
      %p285 = por %p283, %p284
      %p286 = scmp.ne.s32.totalorder %s272, %s273
      %p287 = scmp.eq.s32.totalorder %s29, 2
      %p288 = por %p286, %p287
      %p290 = scmp.ne.s32.totalorder %s273, %s289
      %p291 = scmp.eq.s32.totalorder %s29, 0
      %p292 = por %p290, %p291
      %p293 = scmp.le.s32.totalorder 1, %s23
      %p294 = scmp.lt.s32.totalorder %s23, 4
      %p295 = pnand %p293, %p294
      %p296 = pneg %p295
      // Predicated region
      $region9: #{tpu_custom_call.1} parent=5 // pred_check
        _
      $region10: #{tpu_custom_call.1} parent=5 // pred_check_branch
        %298 = sbr.rel (%p295) target = $region12
      $region11: #{tpu_custom_call.1} parent=5 // pred_region
        %s299 = ssub.s32 %s23, 1
        // Predicated region
        $region13: #{tpu_custom_call.1} parent=11 // pred_check
          %p300 = pneg %p70
        $region14: #{tpu_custom_call.1} parent=11 // pred_check_branch
          %302 = sbr.rel (%p300) target = $region16
        $region15: #{tpu_custom_call.1} parent=11 // pred_region
          _
        $region16: #{tpu_custom_call.1} parent=11 // pred_fallthru
          _
        // Predicated region
        $region17: #{tpu_custom_call.1} parent=11 // pred_check
          %p303 = pneg %p91
        $region18: #{tpu_custom_call.1} parent=11 // pred_check_branch
          %305 = sbr.rel (%p303) target = $region20
        $region19: #{tpu_custom_call.1} parent=11 // pred_region
          _
        $region20: #{tpu_custom_call.1} parent=11 // pred_fallthru
          _
        // Predicated region
        $region21: #{tpu_custom_call.1} parent=11 // pred_check
          %p306 = pneg %p112
        $region22: #{tpu_custom_call.1} parent=11 // pred_check_branch
          %308 = sbr.rel (%p306) target = $region24
        $region23: #{tpu_custom_call.1} parent=11 // pred_region
          %s310 = ssub.s32 512, 512
          %311 = vsyncadd [#allocation6], %s310
          %s312 = sshll.u32 [#allocation5], 4
          %s313 = int_to_ptr.vmem [resolvable:$true] %s312
          %318 = dma.hbm_to_vmem [thread:$0]  %s3, 512, %s313, [#allocation6], 128, 128, 8
        $region24: #{tpu_custom_call.1} parent=11 // pred_fallthru
          _
        // Predicated region
        $region25: #{tpu_custom_call.1} parent=11 // pred_check
          %p319 = pneg %p133
        $region26: #{tpu_custom_call.1} parent=11 // pred_check_branch
          %321 = sbr.rel (%p319) target = $region28
        $region27: #{tpu_custom_call.1} parent=11 // pred_region
          _
        $region28: #{tpu_custom_call.1} parent=11 // pred_fallthru
          _
        // Predicated region
        $region29: #{tpu_custom_call.1} parent=11 // pred_check
          %p322 = pneg %p154
        $region30: #{tpu_custom_call.1} parent=11 // pred_check_branch
          %324 = sbr.rel (%p322) target = $region32
        $region31: #{tpu_custom_call.1} parent=11 // pred_region
          %s326 = ssub.s32 512, 512
          %327 = vsyncadd [#allocation6], %s326
          %s328 = sshll.u32 [#allocation7], 4
          %s329 = int_to_ptr.vmem [resolvable:$true] %s328
          %334 = dma.hbm_to_vmem [thread:$0]  %s5, 512, %s329, [#allocation6], 128, 128, 8
        $region32: #{tpu_custom_call.1} parent=11 // pred_fallthru
          _
        // Predicated region
        $region33: #{tpu_custom_call.1} parent=11 // pred_check
          %p335 = pneg %p175
        $region34: #{tpu_custom_call.1} parent=11 // pred_check_branch
          %337 = sbr.rel (%p335) target = $region36
        $region35: #{tpu_custom_call.1} parent=11 // pred_region
          _
        $region36: #{tpu_custom_call.1} parent=11 // pred_fallthru
          _
        // Predicated region
        $region37: #{tpu_custom_call.1} parent=11 // pred_check
          %p338 = pneg %p196
        $region38: #{tpu_custom_call.1} parent=11 // pred_check_branch
          %340 = sbr.rel (%p338) target = $region40
        $region39: #{tpu_custom_call.1} parent=11 // pred_region
          %s342 = ssub.s32 512, 512
          %343 = vsyncadd [#allocation9], %s342
          %s344 = sshll.u32 [#allocation8], 4
          %s345 = int_to_ptr.vmem [resolvable:$true] %s344
          %350 = dma.hbm_to_vmem [thread:$0]  %s7, 512, %s345, [#allocation9], 128, 128, 8
        $region40: #{tpu_custom_call.1} parent=11 // pred_fallthru
          _
        // Predicated region
        $region41: #{tpu_custom_call.1} parent=11 // pred_check
          %p351 = pneg %p217
        $region42: #{tpu_custom_call.1} parent=11 // pred_check_branch
          %353 = sbr.rel (%p351) target = $region44
        $region43: #{tpu_custom_call.1} parent=11 // pred_region
          _
        $region44: #{tpu_custom_call.1} parent=11 // pred_fallthru
          _
        // Predicated region
        $region45: #{tpu_custom_call.1} parent=11 // pred_check
          %p354 = pneg %p238
        $region46: #{tpu_custom_call.1} parent=11 // pred_check_branch
          %356 = sbr.rel (%p354) target = $region48
        $region47: #{tpu_custom_call.1} parent=11 // pred_region
          _
        $region48: #{tpu_custom_call.1} parent=11 // pred_fallthru
          _
        // Predicated region
        $region49: #{tpu_custom_call.1} parent=11 // pred_check
          %p357 = pneg %p259
        $region50: #{tpu_custom_call.1} parent=11 // pred_check_branch
          %359 = sbr.rel (%p357) target = $region52
        $region51: #{tpu_custom_call.1} parent=11 // pred_region
          _
        $region52: #{tpu_custom_call.1} parent=11 // pred_fallthru
          _
      $region12: #{tpu_custom_call.1} parent=5 // pred_fallthru
        _
      %p360 = scmp.lt.s32.totalorder %s23, 3
      // Predicated region
      $region53: #{tpu_custom_call.1} parent=5 // pred_check
        %p361 = pneg %p360
      $region54: #{tpu_custom_call.1} parent=5 // pred_check_branch
        %363 = sbr.rel (%p361) target = $region56
      $region55: #{tpu_custom_call.1} parent=5 // pred_region
        // Predicated region
        $region57: #{tpu_custom_call.1} parent=55 // pred_check
          %p364 = pneg %p43
        $region58: #{tpu_custom_call.1} parent=55 // pred_check_branch
          %366 = sbr.rel (%p364) target = $region60
        $region59: #{tpu_custom_call.1} parent=55 // pred_region
          %s367 = sand.u32 %s33, 1
          %s368 = scalar_lea.sflag [#allocation4], %s367
          %s369 = sand.u32 %s33, 1
          %s370 = smul.addr %s369, 8
          %s371 = scalar_lea.vmem [#allocation3], %s370
          %s373 = ssub.s32 128, 128
          %374 = vsyncadd %s368, %s373
          %s375 = smul.addr %s23, 128
          %s376 = scalar_lea.hbm %s0, %s375
          %s378 = sshll.u32 %s371, 4
          %s379 = int_to_ptr.vmem [resolvable:$true] %s378
          %381 = dma.hbm_to_vmem [thread:$0]  %s376, 128, %s379, %s368
        $region60: #{tpu_custom_call.1} parent=55 // pred_fallthru
          _
      $region56: #{tpu_custom_call.1} parent=5 // pred_fallthru
        _
      %p382 = scmp.le.s32.totalorder 1, %s23
      %p383 = scmp.lt.s32.totalorder %s23, 4
      %p384 = pnand %p382, %p383
      %p385 = pneg %p384
      // Predicated region
      $region61: #{tpu_custom_call.1} parent=5 // pred_check
        _
      $region62: #{tpu_custom_call.1} parent=5 // pred_check_branch
        %387 = sbr.rel (%p384) target = $region64
      $region63: #{tpu_custom_call.1} parent=5 // pred_region
        %s388 = ssub.s32 %s23, 1
        %s389 = sand.u32 %s36, 1
        %s390 = scalar_lea.sflag [#allocation4], %s389
        %s391 = sand.u32 %s36, 1
        %s392 = smul.addr %s391, 8
        %s393 = scalar_lea.vmem [#allocation3], %s392
        // Predicated region
        $region65: #{tpu_custom_call.1} parent=63 // pred_check
          %p394 = pneg %p49
        $region66: #{tpu_custom_call.1} parent=63 // pred_check_branch
          %396 = sbr.rel (%p394) target = $region68
        $region67: #{tpu_custom_call.1} parent=63 // pred_region
          %397 = dma.done %s390, 128
        $region68: #{tpu_custom_call.1} parent=63 // pred_fallthru
          _
        // Predicated region
        $region69: #{tpu_custom_call.1} parent=63 // pred_check
          %p398 = pneg %p112
        $region70: #{tpu_custom_call.1} parent=63 // pred_check_branch
          %400 = sbr.rel (%p398) target = $region72
        $region71: #{tpu_custom_call.1} parent=63 // pred_region
          %401 = dma.done [#allocation6], 512
        $region72: #{tpu_custom_call.1} parent=63 // pred_fallthru
          _
        // Predicated region
        $region73: #{tpu_custom_call.1} parent=63 // pred_check
          %p402 = pneg %p154
        $region74: #{tpu_custom_call.1} parent=63 // pred_check_branch
          %404 = sbr.rel (%p402) target = $region76
        $region75: #{tpu_custom_call.1} parent=63 // pred_region
          %405 = dma.done [#allocation6], 512
        $region76: #{tpu_custom_call.1} parent=63 // pred_fallthru
          _
        // Predicated region
        $region77: #{tpu_custom_call.1} parent=63 // pred_check
          %p406 = pneg %p196
        $region78: #{tpu_custom_call.1} parent=63 // pred_check_branch
          %408 = sbr.rel (%p406) target = $region80
        $region79: #{tpu_custom_call.1} parent=63 // pred_region
          %409 = dma.done [#allocation9], 512
        $region80: #{tpu_custom_call.1} parent=63 // pred_fallthru
          _
        %s410 = sand.u32 %s36, 1
        %s411 = scalar_lea.sflag [#allocation4], %s410
        %s412 = sand.u32 %s36, 1
        %s413 = smul.addr %s412, 8
        %s414 = scalar_lea.vmem [#allocation3], %s413
        %p415 = pneg %p49
        %p416 = pneg %p46
        %p417 = pneg %p70
        %p418 = pneg %p67
        %p419 = pneg %p91
        %p420 = pneg %p88
        %p421 = pneg %p112
        %p422 = pneg %p109
        %p423 = pneg %p133
        %p424 = pneg %p130
        %p425 = pneg %p154
        %p426 = pneg %p151
        %p427 = pneg %p175
        %p428 = pneg %p172
        %p429 = pneg %p196
        %p430 = pneg %p193
        %p431 = pneg %p217
        %p432 = pneg %p214
        %p433 = pneg %p238
        %p434 = pneg %p235
        %p435 = pneg %p259
        %p436 = pneg %p256
        %p437 = pneg %p285
        %p438 = pneg %p282
        %p439 = scmp.lt.s32.totalorder %s28, 2
        %s440 = scalar_select %p439, %s28, 2
        %s441 = smul.addr %s440, 8
        %s442 = scalar_lea.vmem %s11, %s441
        %p443 = scmp.lt.s32.totalorder %s28, 2
        %s444 = scalar_select %p443, %s28, 2
        %s445 = smul.addr %s444, 8
        %s446 = scalar_lea.vmem %s11, %s445
        %v447 = vld [vmem:[%s393] sm:$0xff]
        %v448 = vld [vmem:[%s1] sm:$0xff]
        %v449 = vld [vmem:[%s1 + $0x8] sm:$0xff]
        %v450 = vld [vmem:[%s1 + $0x10] sm:$0xff]
        %v451 = vld [vmem:[%s1 + $0x18] sm:$0xff]
        %v452 = vld [vmem:[%s2] sm:$0x1]
        %v454 = vlaneseq
        %v455 = vshrl.u32 %v454, 7
        %v456 = vsub.s32 0, %v455
        %v457 = vrot.slane %v452, %v456
        %vm459 = vcmask 261120
        %v461 = vsel %vm459, %v447, 0
        %463 = vmatprep.subr.mxu0 0.0
        %464 = vmatpush1.msra.mxu0 %v448
        %465 = vmatprep.subr.mxu0 0.0
        %466 = vmatpush1.msra.mxu0 %v449
        %467 = vmatprep.subr.mxu0 0.0
        %468 = vmatpush1.msra.mxu0 %v450
        %469 = vmatprep.subr.mxu0 0.0
        %470 = vmatpush1.msra.mxu0 %v451
        %471 = vmatprep.subr.mxu0 0.0
        %472 = vmatpush1.msra.mxu0 0.0
        %473 = vmatprep.subr.mxu0 0.0
        %474 = vmatpush1.msra.mxu0 0.0
        %475 = vmatprep.subr.mxu0 0.0
        %476 = vmatpush1.msra.mxu0 0.0
        %477 = vmatprep.subr.mxu0 0.0
        %478 = vmatpush1.msra.mxu0 0.0
        %479 = vmatprep.subr.mxu0 0.0
        %480 = vmatpush1.msra.mxu0 0.0
        %481 = vmatprep.subr.mxu0 0.0
        %482 = vmatpush1.msra.mxu0 0.0
        %483 = vmatprep.subr.mxu0 0.0
        %484 = vmatpush1.msra.mxu0 0.0
        %485 = vmatprep.subr.mxu0 0.0
        %486 = vmatpush1.msra.mxu0 0.0
        %487 = vmatprep.subr.mxu0 0.0
        %488 = vmatpush1.msra.mxu0 0.0
        %489 = vmatprep.subr.mxu0 0.0
        %490 = vmatpush1.msra.mxu0 0.0
        %491 = vmatprep.subr.mxu0 0.0
        %492 = vmatpush1.msra.mxu0 0.0
        %493 = vmatprep.subr.mxu0 0.0
        %494 = vmatpush1.msra.mxu0 0.0
        %495 = vmatprep.subr.mxu0 0.0
        %496 = vmatpush1.msra.mxu0 0.0
        %497 = vmatprep.subr.mxu0 0.0
        %498 = vmatpush1.msra.mxu0 0.0
        %499 = vmatprep.subr.mxu0 0.0
        %500 = vmatpush1.msra.mxu0 0.0
        %501 = vmatprep.subr.mxu0 0.0
        %502 = vmatpush1.msra.mxu0 0.0
        %503 = vmatprep.subr.mxu0 0.0
        %504 = vmatpush1.msra.mxu0 0.0
        %505 = vmatprep.subr.mxu0 0.0
        %506 = vmatpush1.msra.mxu0 0.0
        %507 = vmatprep.subr.mxu0 0.0
        %508 = vmatpush1.msra.mxu0 0.0
        %509 = vmatprep.subr.mxu0 0.0
        %510 = vmatpush1.msra.mxu0 0.0
        %511 = vmatprep.subr.mxu0 0.0
        %512 = vmatpush1.msra.mxu0 0.0
        %513 = vmatprep.subr.mxu0 0.0
        %514 = vmatpush1.msra.mxu0 0.0
        %515 = vmatprep.subr.mxu0 0.0
        %516 = vmatpush1.msra.mxu0 0.0
        %517 = vmatprep.subr.mxu0 0.0
        %518 = vmatpush1.msra.mxu0 0.0
        %519 = vmatprep.subr.mxu0 0.0
        %520 = vmatpush1.msra.mxu0 0.0
        %521 = vmatprep.subr.mxu0 0.0
        %522 = vmatpush1.msra.mxu0 0.0
        %523 = vmatprep.subr.mxu0 0.0
        %524 = vmatpush1.msra.mxu0 0.0
        %525 = vmatprep.subr.mxu0 0.0
        %526 = vmatpush1.msra.mxu0 0.0
        %527 = vmatprep.mubr.f32.mxu0 0.0
        %528 = vmatmul.mubr.f32.gmra.mrb[0].mxu0 %v461
        %v529 = vpop.f32.mrb[0].mxu0
        %v530 = vadd.f32 %v457, %v529
        %v531 = vpop.f32.mrb[0].mxu0
        %532 = vdwg.mxu0
        %v533 = vmax.f32 %v530, 0.0
        %v534 = vld [vmem:[#allocation5] sm:$0xff]
        %v535 = vld [vmem:[#allocation5 + $0x8] sm:$0xff]
        %v536 = vld [vmem:[#allocation5 + $0x10] sm:$0xff]
        %v537 = vld [vmem:[#allocation5 + $0x18] sm:$0xff]
        %v538 = vld [vmem:[%s4] sm:$0x1]
        %v540 = vlaneseq
        %v541 = vshrl.u32 %v540, 7
        %v542 = vsub.s32 0, %v541
        %v543 = vrot.slane %v538, %v542
        %v546 = vsel %vm459, %v533, 0
        %548 = vmatprep.subr.mxu0 0.0
        %549 = vmatpush1.msra.mxu0 %v534
        %550 = vmatprep.subr.mxu0 0.0
        %551 = vmatpush1.msra.mxu0 %v535
        %552 = vmatprep.subr.mxu0 0.0
        %553 = vmatpush1.msra.mxu0 %v536
        %554 = vmatprep.subr.mxu0 0.0
        %555 = vmatpush1.msra.mxu0 %v537
        %556 = vmatprep.subr.mxu0 0.0
        %557 = vmatpush1.msra.mxu0 0.0
        %558 = vmatprep.subr.mxu0 0.0
        %559 = vmatpush1.msra.mxu0 0.0
        %560 = vmatprep.subr.mxu0 0.0
        %561 = vmatpush1.msra.mxu0 0.0
        %562 = vmatprep.subr.mxu0 0.0
        %563 = vmatpush1.msra.mxu0 0.0
        %564 = vmatprep.subr.mxu0 0.0
        %565 = vmatpush1.msra.mxu0 0.0
        %566 = vmatprep.subr.mxu0 0.0
        %567 = vmatpush1.msra.mxu0 0.0
        %568 = vmatprep.subr.mxu0 0.0
        %569 = vmatpush1.msra.mxu0 0.0
        %570 = vmatprep.subr.mxu0 0.0
        %571 = vmatpush1.msra.mxu0 0.0
        %572 = vmatprep.subr.mxu0 0.0
        %573 = vmatpush1.msra.mxu0 0.0
        %574 = vmatprep.subr.mxu0 0.0
        %575 = vmatpush1.msra.mxu0 0.0
        %576 = vmatprep.subr.mxu0 0.0
        %577 = vmatpush1.msra.mxu0 0.0
        %578 = vmatprep.subr.mxu0 0.0
        %579 = vmatpush1.msra.mxu0 0.0
        %580 = vmatprep.subr.mxu0 0.0
        %581 = vmatpush1.msra.mxu0 0.0
        %582 = vmatprep.subr.mxu0 0.0
        %583 = vmatpush1.msra.mxu0 0.0
        %584 = vmatprep.subr.mxu0 0.0
        %585 = vmatpush1.msra.mxu0 0.0
        %586 = vmatprep.subr.mxu0 0.0
        %587 = vmatpush1.msra.mxu0 0.0
        %588 = vmatprep.subr.mxu0 0.0
        %589 = vmatpush1.msra.mxu0 0.0
        %590 = vmatprep.subr.mxu0 0.0
        %591 = vmatpush1.msra.mxu0 0.0
        %592 = vmatprep.subr.mxu0 0.0
        %593 = vmatpush1.msra.mxu0 0.0
        %594 = vmatprep.subr.mxu0 0.0
        %595 = vmatpush1.msra.mxu0 0.0
        %596 = vmatprep.subr.mxu0 0.0
        %597 = vmatpush1.msra.mxu0 0.0
        %598 = vmatprep.subr.mxu0 0.0
        %599 = vmatpush1.msra.mxu0 0.0
        %600 = vmatprep.subr.mxu0 0.0
        %601 = vmatpush1.msra.mxu0 0.0
        %602 = vmatprep.subr.mxu0 0.0
        %603 = vmatpush1.msra.mxu0 0.0
        %604 = vmatprep.subr.mxu0 0.0
        %605 = vmatpush1.msra.mxu0 0.0
        %606 = vmatprep.subr.mxu0 0.0
        %607 = vmatpush1.msra.mxu0 0.0
        %608 = vmatprep.subr.mxu0 0.0
        %609 = vmatpush1.msra.mxu0 0.0
        %610 = vmatprep.subr.mxu0 0.0
        %611 = vmatpush1.msra.mxu0 0.0
        %612 = vmatprep.mubr.f32.mxu0 0.0
        %613 = vmatmul.mubr.f32.gmra.mrb[0].mxu0 %v546
        %v614 = vpop.f32.mrb[0].mxu0
        %v615 = vadd.f32 %v543, %v614
        %v616 = vpop.f32.mrb[0].mxu0
        %617 = vdwg.mxu0
        %v618 = vmax.f32 %v615, 0.0
        %v619 = vld [vmem:[#allocation7] sm:$0xff]
        %v620 = vld [vmem:[#allocation7 + $0x8] sm:$0xff]
        %v621 = vld [vmem:[#allocation7 + $0x10] sm:$0xff]
        %v622 = vld [vmem:[#allocation7 + $0x18] sm:$0xff]
        %v623 = vld [vmem:[%s6] sm:$0x1]
        %v625 = vlaneseq
        %v626 = vshrl.u32 %v625, 7
        %v627 = vsub.s32 0, %v626
        %v628 = vrot.slane %v623, %v627
        %v631 = vsel %vm459, %v618, 0
        %633 = vmatprep.subr.mxu0 0.0
        %634 = vmatpush1.msra.mxu0 %v619
        %635 = vmatprep.subr.mxu0 0.0
        %636 = vmatpush1.msra.mxu0 %v620
        %637 = vmatprep.subr.mxu0 0.0
        %638 = vmatpush1.msra.mxu0 %v621
        %639 = vmatprep.subr.mxu0 0.0
        %640 = vmatpush1.msra.mxu0 %v622
        %641 = vmatprep.subr.mxu0 0.0
        %642 = vmatpush1.msra.mxu0 0.0
        %643 = vmatprep.subr.mxu0 0.0
        %644 = vmatpush1.msra.mxu0 0.0
        %645 = vmatprep.subr.mxu0 0.0
        %646 = vmatpush1.msra.mxu0 0.0
        %647 = vmatprep.subr.mxu0 0.0
        %648 = vmatpush1.msra.mxu0 0.0
        %649 = vmatprep.subr.mxu0 0.0
        %650 = vmatpush1.msra.mxu0 0.0
        %651 = vmatprep.subr.mxu0 0.0
        %652 = vmatpush1.msra.mxu0 0.0
        %653 = vmatprep.subr.mxu0 0.0
        %654 = vmatpush1.msra.mxu0 0.0
        %655 = vmatprep.subr.mxu0 0.0
        %656 = vmatpush1.msra.mxu0 0.0
        %657 = vmatprep.subr.mxu0 0.0
        %658 = vmatpush1.msra.mxu0 0.0
        %659 = vmatprep.subr.mxu0 0.0
        %660 = vmatpush1.msra.mxu0 0.0
        %661 = vmatprep.subr.mxu0 0.0
        %662 = vmatpush1.msra.mxu0 0.0
        %663 = vmatprep.subr.mxu0 0.0
        %664 = vmatpush1.msra.mxu0 0.0
        %665 = vmatprep.subr.mxu0 0.0
        %666 = vmatpush1.msra.mxu0 0.0
        %667 = vmatprep.subr.mxu0 0.0
        %668 = vmatpush1.msra.mxu0 0.0
        %669 = vmatprep.subr.mxu0 0.0
        %670 = vmatpush1.msra.mxu0 0.0
        %671 = vmatprep.subr.mxu0 0.0
        %672 = vmatpush1.msra.mxu0 0.0
        %673 = vmatprep.subr.mxu0 0.0
        %674 = vmatpush1.msra.mxu0 0.0
        %675 = vmatprep.subr.mxu0 0.0
        %676 = vmatpush1.msra.mxu0 0.0
        %677 = vmatprep.subr.mxu0 0.0
        %678 = vmatpush1.msra.mxu0 0.0
        %679 = vmatprep.subr.mxu0 0.0
        %680 = vmatpush1.msra.mxu0 0.0
        %681 = vmatprep.subr.mxu0 0.0
        %682 = vmatpush1.msra.mxu0 0.0
        %683 = vmatprep.subr.mxu0 0.0
        %684 = vmatpush1.msra.mxu0 0.0
        %685 = vmatprep.subr.mxu0 0.0
        %686 = vmatpush1.msra.mxu0 0.0
        %687 = vmatprep.subr.mxu0 0.0
        %688 = vmatpush1.msra.mxu0 0.0
        %689 = vmatprep.subr.mxu0 0.0
        %690 = vmatpush1.msra.mxu0 0.0
        %691 = vmatprep.subr.mxu0 0.0
        %692 = vmatpush1.msra.mxu0 0.0
        %693 = vmatprep.subr.mxu0 0.0
        %694 = vmatpush1.msra.mxu0 0.0
        %695 = vmatprep.subr.mxu0 0.0
        %696 = vmatpush1.msra.mxu0 0.0
        %697 = vmatprep.mubr.f32.mxu0 0.0
        %698 = vmatmul.mubr.f32.gmra.mrb[0].mxu0 %v631
        %v699 = vpop.f32.mrb[0].mxu0
        %v700 = vadd.f32 %v628, %v699
        %v701 = vpop.f32.mrb[0].mxu0
        %702 = vdwg.mxu0
        %v703 = vmax.f32 %v700, 0.0
        %v704 = vld [vmem:[#allocation8] sm:$0xff]
        %v705 = vld [vmem:[#allocation8 + $0x8] sm:$0xff]
        %v706 = vld [vmem:[#allocation8 + $0x10] sm:$0xff]
        %v707 = vld [vmem:[#allocation8 + $0x18] sm:$0xff]
        %v708 = vld [vmem:[%s8] sm:$0x1]
        %v710 = vlaneseq
        %v711 = vshrl.u32 %v710, 7
        %v712 = vsub.s32 0, %v711
        %v713 = vrot.slane %v708, %v712
        %v716 = vsel %vm459, %v703, 0
        %718 = vmatprep.subr.mxu0 0.0
        %719 = vmatpush1.msra.mxu0 %v704
        %720 = vmatprep.subr.mxu0 0.0
        %721 = vmatpush1.msra.mxu0 %v705
        %722 = vmatprep.subr.mxu0 0.0
        %723 = vmatpush1.msra.mxu0 %v706
        %724 = vmatprep.subr.mxu0 0.0
        %725 = vmatpush1.msra.mxu0 %v707
        %726 = vmatprep.subr.mxu0 0.0
        %727 = vmatpush1.msra.mxu0 0.0
        %728 = vmatprep.subr.mxu0 0.0
        %729 = vmatpush1.msra.mxu0 0.0
        %730 = vmatprep.subr.mxu0 0.0
        %731 = vmatpush1.msra.mxu0 0.0
        %732 = vmatprep.subr.mxu0 0.0
        %733 = vmatpush1.msra.mxu0 0.0
        %734 = vmatprep.subr.mxu0 0.0
        %735 = vmatpush1.msra.mxu0 0.0
        %736 = vmatprep.subr.mxu0 0.0
        %737 = vmatpush1.msra.mxu0 0.0
        %738 = vmatprep.subr.mxu0 0.0
        %739 = vmatpush1.msra.mxu0 0.0
        %740 = vmatprep.subr.mxu0 0.0
        %741 = vmatpush1.msra.mxu0 0.0
        %742 = vmatprep.subr.mxu0 0.0
        %743 = vmatpush1.msra.mxu0 0.0
        %744 = vmatprep.subr.mxu0 0.0
        %745 = vmatpush1.msra.mxu0 0.0
        %746 = vmatprep.subr.mxu0 0.0
        %747 = vmatpush1.msra.mxu0 0.0
        %748 = vmatprep.subr.mxu0 0.0
        %749 = vmatpush1.msra.mxu0 0.0
        %750 = vmatprep.subr.mxu0 0.0
        %751 = vmatpush1.msra.mxu0 0.0
        %752 = vmatprep.subr.mxu0 0.0
        %753 = vmatpush1.msra.mxu0 0.0
        %754 = vmatprep.subr.mxu0 0.0
        %755 = vmatpush1.msra.mxu0 0.0
        %756 = vmatprep.subr.mxu0 0.0
        %757 = vmatpush1.msra.mxu0 0.0
        %758 = vmatprep.subr.mxu0 0.0
        %759 = vmatpush1.msra.mxu0 0.0
        %760 = vmatprep.subr.mxu0 0.0
        %761 = vmatpush1.msra.mxu0 0.0
        %762 = vmatprep.subr.mxu0 0.0
        %763 = vmatpush1.msra.mxu0 0.0
        %764 = vmatprep.subr.mxu0 0.0
        %765 = vmatpush1.msra.mxu0 0.0
        %766 = vmatprep.subr.mxu0 0.0
        %767 = vmatpush1.msra.mxu0 0.0
        %768 = vmatprep.subr.mxu0 0.0
        %769 = vmatpush1.msra.mxu0 0.0
        %770 = vmatprep.subr.mxu0 0.0
        %771 = vmatpush1.msra.mxu0 0.0
        %772 = vmatprep.subr.mxu0 0.0
        %773 = vmatpush1.msra.mxu0 0.0
        %774 = vmatprep.subr.mxu0 0.0
        %775 = vmatpush1.msra.mxu0 0.0
        %776 = vmatprep.subr.mxu0 0.0
        %777 = vmatpush1.msra.mxu0 0.0
        %778 = vmatprep.subr.mxu0 0.0
        %779 = vmatpush1.msra.mxu0 0.0
        %780 = vmatprep.subr.mxu0 0.0
        %781 = vmatpush1.msra.mxu0 0.0
        %782 = vmatprep.mubr.f32.mxu0 0.0
        %783 = vmatmul.mubr.f32.gmra.mrb[0].mxu0 %v716
        %v784 = vpop.f32.mrb[0].mxu0
        %v785 = vadd.f32 %v713, %v784
        %v786 = vpop.f32.mrb[0].mxu0
        %787 = vdwg.mxu0
        %v788 = vmax.f32 %v785, 0.0
        %v789 = vld [vmem:[%s9] sm:$0xff]
        %v790 = vld [vmem:[%s9 + $0x8] sm:$0xff]
        %v791 = vld [vmem:[%s9 + $0x10] sm:$0xff]
        %v792 = vld [vmem:[%s9 + $0x18] sm:$0xff]
        %s793 = sld [smem:[#allocation2]]
        %v794 = vstv %s793
        %v796 = vsel %vm459, %v788, 0
        %798 = vmatprep.subr.mxu0 0.0
        %799 = vmatpush1.msra.mxu0 %v789
        %800 = vmatprep.subr.mxu0 0.0
        %801 = vmatpush1.msra.mxu0 %v790
        %802 = vmatprep.subr.mxu0 0.0
        %803 = vmatpush1.msra.mxu0 %v791
        %804 = vmatprep.subr.mxu0 0.0
        %805 = vmatpush1.msra.mxu0 %v792
        %806 = vmatprep.subr.mxu0 0.0
        %807 = vmatpush1.msra.mxu0 0.0
        %808 = vmatprep.subr.mxu0 0.0
        %809 = vmatpush1.msra.mxu0 0.0
        %810 = vmatprep.subr.mxu0 0.0
        %811 = vmatpush1.msra.mxu0 0.0
        %812 = vmatprep.subr.mxu0 0.0
        %813 = vmatpush1.msra.mxu0 0.0
        %814 = vmatprep.subr.mxu0 0.0
        %815 = vmatpush1.msra.mxu0 0.0
        %816 = vmatprep.subr.mxu0 0.0
        %817 = vmatpush1.msra.mxu0 0.0
        %818 = vmatprep.subr.mxu0 0.0
        %819 = vmatpush1.msra.mxu0 0.0
        %820 = vmatprep.subr.mxu0 0.0
        %821 = vmatpush1.msra.mxu0 0.0
        %822 = vmatprep.subr.mxu0 0.0
        %823 = vmatpush1.msra.mxu0 0.0
        %824 = vmatprep.subr.mxu0 0.0
        %825 = vmatpush1.msra.mxu0 0.0
        %826 = vmatprep.subr.mxu0 0.0
        %827 = vmatpush1.msra.mxu0 0.0
        %828 = vmatprep.subr.mxu0 0.0
        %829 = vmatpush1.msra.mxu0 0.0
        %830 = vmatprep.subr.mxu0 0.0
        %831 = vmatpush1.msra.mxu0 0.0
        %832 = vmatprep.subr.mxu0 0.0
        %833 = vmatpush1.msra.mxu0 0.0
        %834 = vmatprep.subr.mxu0 0.0
        %835 = vmatpush1.msra.mxu0 0.0
        %836 = vmatprep.subr.mxu0 0.0
        %837 = vmatpush1.msra.mxu0 0.0
        %838 = vmatprep.subr.mxu0 0.0
        %839 = vmatpush1.msra.mxu0 0.0
        %840 = vmatprep.subr.mxu0 0.0
        %841 = vmatpush1.msra.mxu0 0.0
        %842 = vmatprep.subr.mxu0 0.0
        %843 = vmatpush1.msra.mxu0 0.0
        %844 = vmatprep.subr.mxu0 0.0
        %845 = vmatpush1.msra.mxu0 0.0
        %846 = vmatprep.subr.mxu0 0.0
        %847 = vmatpush1.msra.mxu0 0.0
        %848 = vmatprep.subr.mxu0 0.0
        %849 = vmatpush1.msra.mxu0 0.0
        %850 = vmatprep.subr.mxu0 0.0
        %851 = vmatpush1.msra.mxu0 0.0
        %852 = vmatprep.subr.mxu0 0.0
        %853 = vmatpush1.msra.mxu0 0.0
        %854 = vmatprep.subr.mxu0 0.0
        %855 = vmatpush1.msra.mxu0 0.0
        %856 = vmatprep.subr.mxu0 0.0
        %857 = vmatpush1.msra.mxu0 0.0
        %858 = vmatprep.subr.mxu0 0.0
        %859 = vmatpush1.msra.mxu0 0.0
        %860 = vmatprep.subr.mxu0 0.0
        %861 = vmatpush1.msra.mxu0 0.0
        %862 = vmatprep.mubr.f32.mxu0 0.0
        %863 = vmatmul.mubr.f32.gmra.mrb[0].mxu0 %v796
        %v864 = vpop.f32.mrb[0].mxu0
        %v865 = vadd.f32 %v794, %v864
        %v866 = vpop.f32.mrb[0].mxu0
        %867 = vdwg.mxu0
        %vm868 = vcmask 7168
        %869 = vst.msk [vmem:[%s446] sm:$0xff] %vm868, %v865
        %p870 = scmp.lt.s32.totalorder %s28, 2
        %s871 = scalar_select %p870, %s28, 2
        %s872 = smul.addr %s871, 8
        %s873 = scalar_lea.vmem %s11, %s872
        // Predicated region
        $region81: #{tpu_custom_call.1} parent=63 // pred_check
          %p874 = pneg %p282
        $region82: #{tpu_custom_call.1} parent=63 // pred_check_branch
          %876 = sbr.rel (%p874) target = $region84
        $region83: #{tpu_custom_call.1} parent=63 // pred_region
          _
        $region84: #{tpu_custom_call.1} parent=63 // pred_fallthru
          _
      $region64: #{tpu_custom_call.1} parent=5 // pred_fallthru
        _
      %p877 = scmp.le.s32.totalorder 2, %s23
      // Predicated region
      $region85: #{tpu_custom_call.1} parent=5 // pred_check
        %p878 = pneg %p877
      $region86: #{tpu_custom_call.1} parent=5 // pred_check_branch
        %880 = sbr.rel (%p878) target = $region88
      $region87: #{tpu_custom_call.1} parent=5 // pred_region
        %s881 = ssub.s32 %s23, 2
        // Predicated region
        $region89: #{tpu_custom_call.1} parent=87 // pred_check
          %p882 = pneg %p288
        $region90: #{tpu_custom_call.1} parent=87 // pred_check_branch
          %884 = sbr.rel (%p882) target = $region92
        $region91: #{tpu_custom_call.1} parent=87 // pred_region
          %p885 = scmp.lt.s32.totalorder %s29, 2
          %s886 = scalar_select %p885, %s29, 2
          %s887 = smul.addr %s886, 8
          %s888 = scalar_lea.vmem %s11, %s887
        $region92: #{tpu_custom_call.1} parent=87 // pred_fallthru
          _
      $region88: #{tpu_custom_call.1} parent=5 // pred_fallthru
        _
    $region6: #{tpu_custom_call.1} parent=1 // loop_footer
      %s27 = sadd.s32 1, %s23
    $region7: #{tpu_custom_call.1} parent=1 // loop_footer_branch
      %22 = sbr.rel target = $region3
    $region8: #{tpu_custom_call.1} parent=1 // loop_exit
      _
    %889 = vsyncpa [#allocation4], 1
    %s890 = scalar_lea.sflag [#allocation4], 1
    %891 = vsyncpa %s890, 1
    %892 = vsyncpa [#allocation6], 1
    %893 = vsyncpa [#allocation9], 1

</llo_original>
